<compile_context>
chip_gen: v5e
topology: v5e:2x2
jax: 0.10.0
libtpu: 0.0.40
codegen_flags: <defaults>
</compile_context>

<pallas_src>
import jax
import jax.numpy as jnp
from jax.experimental import pallas as pl
from jax.experimental.pallas import tpu as pltpu

NEG_SLOPE = 0.01            # nn.LeakyReLU() default
LANE = 128
SUB = 8
VMEM_LIMIT_BYTES = 32 * 1024 * 1024   # safe scoped-VMEM ceiling on v5e/v6e/v7x


def _leaky_relu(z):
    return jnp.where(z >= 0, z, NEG_SLOPE * z)


def _round_up(x, m):
    return ((x + m - 1) // m) * m


# ----------------------------------------------------------------------------
# Kernels
# ----------------------------------------------------------------------------
def _make_fused_kernel(hidden_size):
    """Small-H path: fused actor|critic towers, single lane-dense output slab."""
    H = hidden_size

    def kernel(x_ref,                      # (TB, F)          compute dtype
               w1_ref, b1_ref,             # (F, 2H), (1, 2H)
               w2_ref, b2_ref,             # (2H, 2H) block-diag, (1, 2H)
               w3_ref, b3_ref,             # (2H, OUT_W) zero-padded, (1, OUT_W)
               vw_ref,                     # (1, OUT_W) value row (zeros off critic)
               vb_ref,                     # (1, 1) SMEM scalar
               out_ref):                   # (TB, OUT_W) = [actor | value bcast | pad]
        cdt = w1_ref.dtype
        x = x_ref[...]
        h = _leaky_relu(jnp.dot(x, w1_ref[...],
                                preferred_element_type=jnp.float32) + b1_ref[...])
        h = _leaky_relu(jnp.dot(h.astype(cdt), w2_ref[...],
                                preferred_element_type=jnp.float32) + b2_ref[...])
        h = _leaky_relu(jnp.dot(h.astype(cdt), w3_ref[...],
                                preferred_element_type=jnp.float32) + b3_ref[...])
        # h: lanes [0,H)=actor, [H,2H)=critic, [2H,OUT_W)=exact zeros (padded weights).
        # Value head as VPU multiply + lane reduction (no N=1 MXU pass).
        v = jnp.sum(h * vw_ref[...], axis=-1, keepdims=True) + vb_ref[0, 0]   # (TB, 1)
        tb, out_w = out_ref.shape
        col = jax.lax.broadcasted_iota(jnp.int32, (tb, out_w), 1)
        out_ref[...] = jnp.where(col < H, h,
                                 jnp.broadcast_to(v, (tb, out_w))).astype(out_ref.dtype)

    return kernel


def _make_unfused_kernel():
    """Large-H path: separate H x H towers, lane-dense actor + 128-lane value blocks."""

    def kernel(x_ref,
               aw1_ref, ab1_ref, aw2_ref, ab2_ref, aw3_ref, ab3_ref,
               cw1_ref, cb1_ref, cw2_ref, cb2_ref, cw3_ref, cb3_ref,
               vw_ref,                      # (1, H) value row (f32)
               vb_ref,                      # (1, 1) SMEM scalar
               actor_ref,                   # (TB, H)
               value_ref):                  # (TB, 128) value broadcast over 128 lanes
        cdt = aw1_ref.dtype
        x = x_ref[...]

        def tower(w1, b1, w2, b2, w3, b3):
            h = _leaky_relu(jnp.dot(x, w1[...],
                                    preferred_element_type=jnp.float32) + b1[...])
            h = _leaky_relu(jnp.dot(h.astype(cdt), w2[...],
                                    preferred_element_type=jnp.float32) + b2[...])
            h = _leaky_relu(jnp.dot(h.astype(cdt), w3[...],
                                    preferred_element_type=jnp.float32) + b3[...])
            return h

        ha = tower(aw1_ref, ab1_ref, aw2_ref, ab2_ref, aw3_ref, ab3_ref)
        hc = tower(cw1_ref, cb1_ref, cw2_ref, cb2_ref, cw3_ref, cb3_ref)
        v = jnp.sum(hc * vw_ref[...], axis=-1, keepdims=True) + vb_ref[0, 0]
        actor_ref[...] = ha.astype(actor_ref.dtype)
        value_ref[...] = jnp.broadcast_to(v, value_ref.shape).astype(value_ref.dtype)

    return kernel


# ----------------------------------------------------------------------------
# One-time parameter preparation (hoisted out of the per-call path)
# ----------------------------------------------------------------------------
def prepare_policy_params(params, *, compute_dtype=jnp.float32,
                          unfuse_hidden_threshold=128):
    """Build kernel-ready weights ONCE.

    H <  threshold: fused towers (layer-1 concat (F,2H); block-diag (2H,2H) layers
                    2/3), last layer / value row zero-padded to a 128-lane multiple.
    H >= threshold: towers kept separate (no zero-block MXU / DMA waste).
    Weights are cast to `compute_dtype` (bf16 halves MXU time + weight bytes on
    v6e/v7x); biases / value row stay f32 (accumulation & activations are f32).
    """
    F, H = params["aw1"].shape
    cdt = jnp.dtype(compute_dtype)
    f32 = jnp.float32
    unfused = H >= unfuse_hidden_threshold

    if unfused:
        tensors = [
            params["aw1"].astype(cdt), params["ab1"].astype(f32),
            params["aw2"].astype(cdt), params["ab2"].astype(f32),
            params["aw3"].astype(cdt), params["ab3"].astype(f32),
            params["cw1"].astype(cdt), params["cb1"].astype(f32),
            params["cw2"].astype(cdt), params["cb2"].astype(f32),
            params["cw3"].astype(cdt), params["cb3"].astype(f32),
            params["vw"].reshape(H, 1).T.astype(f32),          # (1, H)
            params["vb"].reshape(1, 1).astype(f32),            # SMEM scalar
        ]
        out_w = None
    else:
        two_h = 2 * H
        out_w = _round_up(two_h, LANE)
        pad = out_w - two_h
        zhh = jnp.zeros((H, H), f32)
        w1 = jnp.concatenate([params["aw1"], params["cw1"]], axis=1)          # (F, 2H)
        b1 = jnp.concatenate([params["ab1"], params["cb1"]], axis=1)
        w2 = jnp.block([[params["aw2"], zhh], [zhh, params["cw2"]]])          # (2H, 2H)
        b2 = jnp.concatenate([params["ab2"], params["cb2"]], axis=1)
        w3 = jnp.block([[params["aw3"], zhh], [zhh, params["cw3"]]])
        b3 = jnp.concatenate([params["ab3"], params["cb3"]], axis=1)
        # Zero-pad layer 3's N dim (and the value row) to a 128-lane multiple so the
        # output slab uses full unmasked vector stores.
        w3 = jnp.pad(w3, ((0, 0), (0, pad)))
        b3 = jnp.pad(b3, ((0, 0), (0, pad)))
        vw = jnp.concatenate([jnp.zeros((1, H), f32),
                              params["vw"].reshape(H, 1).T.astype(f32),
                              jnp.zeros((1, pad), f32)], axis=1)              # (1, out_w)
        tensors = [
            w1.astype(cdt), b1.astype(f32),
            w2.astype(cdt), b2.astype(f32),
            w3.astype(cdt), b3.astype(f32),
            vw, params["vb"].reshape(1, 1).astype(f32),
        ]

    return dict(unfused=unfused, tensors=tensors, num_inputs=F, hidden_size=H,
                out_width=out_w, compute_dtype=cdt)


# ----------------------------------------------------------------------------
# Forward wrapper
# ----------------------------------------------------------------------------
def policy_forward(inputs, rnn_hxs, masks, prepared, *, block_batch=512):
    """Returns (value, actor_features, rnn_hxs) like MLPBase.forward (non-recurrent)."""
    del masks  # non-recurrent path: masks are only used by the GRU branch
    B, F = inputs.shape
    assert F == prepared["num_inputs"]
    H = prepared["hidden_size"]
    cdt = prepared["compute_dtype"]
    tensors = prepared["tensors"]
    unfused = prepared["unfused"]

    # ---- batch tiling --------------------------------------------------------
    B8 = _round_up(max(B, 1), SUB)
    TB = max(SUB, min(_round_up(block_batch, SUB), B8))
    # Keep >= 2 batch tiles whenever possible so a 2-TensorCore chip (v7x) can
    # shard the 'parallel' grid axis; costs only ~0.35us/extra step elsewhere.
    if B8 >= 2 * SUB:
        TB = min(TB, _round_up(-(-B8 // 2), SUB))

    x_bytes = jnp.dtype(cdt).itemsize
    out_w_total = (H + LANE) if unfused else prepared["out_width"]
    weight_bytes = sum(int(t.size) * t.dtype.itemsize for t in tensors)

    def vmem_estimate(tb):
        # x + outputs are double-buffered by the pipeline; weights are resident
        # (constant index_map) but double-buffered by default.
        streamed = 2 * tb * (F * x_bytes + out_w_total * 4)
        return streamed + 2 * weight_bytes

    budget = int(0.8 * VMEM_LIMIT_BYTES)
    while TB > SUB and vmem_estimate(TB) > budget:
        TB = _round_up(TB // 2, SUB)

    B_pad = _round_up(B8, TB)
    x = inputs.astype(cdt)
    if B_pad != B:
        x = jnp.pad(x, ((0, B_pad - B), (0, 0)))
    grid = (B_pad // TB,)

    # Weight / bias blocks: full-array blocks, constant index_map => resident.
    weight_specs = [pl.BlockSpec(t.shape, lambda i: (0, 0)) for t in tensors[:-1]]
    # critic_linear bias: (1,1) scalar -> SMEM (a VMEM block would round up to a
    # full (8,128) tile and be double-buffered).
    weight_specs.append(
        pl.BlockSpec((1, 1), lambda i: (0, 0), memory_space=pltpu.MemorySpace.SMEM))

    compiler_params = pltpu.CompilerParams(
        dimension_semantics=("parallel",),
        vmem_limit_bytes=VMEM_LIMIT_BYTES,
    )
    x_spec = pl.BlockSpec((TB, F), lambda i: (i, 0))

    if unfused:
        actor_pad, value_pad = pl.pallas_call(
            _make_unfused_kernel(),
            out_shape=(jax.ShapeDtypeStruct((B_pad, H), jnp.float32),
                       jax.ShapeDtypeStruct((B_pad, LANE), jnp.float32)),
            grid_spec=pltpu.PrefetchScalarGridSpec(
                num_scalar_prefetch=0,
                grid=grid,
                in_specs=[x_spec] + weight_specs,
                out_specs=(pl.BlockSpec((TB, H), lambda i: (i, 0)),
                           pl.BlockSpec((TB, LANE), lambda i: (i, 0))),
            ),
            compiler_params=compiler_params,
        )(x, *tensors)
        actor = actor_pad[:B]
        value = value_pad[:B, :1]
    else:
        out_w = prepared["out_width"]
        out_slab = pl.pallas_call(
            _make_fused_kernel(H),
            out_shape=jax.ShapeDtypeStruct((B_pad, out_w), jnp.float32),
            grid_spec=pltpu.PrefetchScalarGridSpec(
                num_scalar_prefetch=0,
                grid=grid,
                in_specs=[x_spec] + weight_specs,
                out_specs=pl.BlockSpec((TB, out_w), lambda i: (i, 0)),
            ),
            compiler_params=compiler_params,
        )(x, *tensors)
        actor = out_slab[:B, :H]
        value = out_slab[:B, H:H + 1]

    # Non-recurrent: rnn_hxs passes through untouched.
    return value, actor, rnn_hxs


# ----------------------------------------------------------------------------
# Synthetic init + pure-JAX reference
# ----------------------------------------------------------------------------
def init_params(key, num_inputs, hidden_size):
    """Deterministic synthetic init: kaiming_uniform-style weights, zero biases."""
    ks = jax.random.split(key, 7)

    def lin(k, fan_in, fan_out):
        bound = (6.0 / fan_in) ** 0.5
        w = jax.random.uniform(k, (fan_in, fan_out), jnp.float32, -bound, bound)
        b = jnp.zeros((1, fan_out), jnp.float32)
        return w, b

    aw1, ab1 = lin(ks[0], num_inputs, hidden_size)
    aw2, ab2 = lin(ks[1], hidden_size, hidden_size)
    aw3, ab3 = lin(ks[2], hidden_size, hidden_size)
    cw1, cb1 = lin(ks[3], num_inputs, hidden_size)
    cw2, cb2 = lin(ks[4], hidden_size, hidden_size)
    cw3, cb3 = lin(ks[5], hidden_size, hidden_size)
    vw, vb = lin(ks[6], hidden_size, 1)
    return dict(aw1=aw1, ab1=ab1, aw2=aw2, ab2=ab2, aw3=aw3, ab3=ab3,
                cw1=cw1, cb1=cb1, cw2=cw2, cb2=cb2, cw3=cw3, cb3=cb3,
                vw=vw, vb=vb)


def reference_forward(inputs, rnn_hxs, params):
    def leaky(z):
        return jnp.where(z >= 0, z, NEG_SLOPE * z)
    a = leaky(inputs @ params["aw1"] + params["ab1"])
    a = leaky(a @ params["aw2"] + params["ab2"])
    a = leaky(a @ params["aw3"] + params["ab3"])
    c = leaky(inputs @ params["cw1"] + params["cb1"])
    c = leaky(c @ params["cw2"] + params["cb2"])
    c = leaky(c @ params["cw3"] + params["cb3"])
    v = c @ params["vw"] + params["vb"]
    return v, a, rnn_hxs


if __name__ == "__main__":
    key = jax.random.PRNGKey(0)
    k_in, k_param, k_in2, k_param2 = jax.random.split(key, 4)

    # --- Case 1: small hidden size -> fused-tower kernel (Policy MLPBase path) ---
    B, F, H = 8, 32, 32
    inputs = jax.random.normal(k_in, (B, F), jnp.float32)
    rnn_hxs = jnp.zeros((B, 1), jnp.float32)   # recurrent_hidden_state_size == 1
    masks = jnp.ones((B, 1), jnp.float32)
    params = init_params(k_param, F, H)
    prepared = prepare_policy_params(params)    # built once, reused every forward

    value, actor, rnn_out = policy_forward(inputs, rnn_hxs, masks, prepared)
    jax.block_until_ready((value, actor, rnn_out))

    v_ref, a_ref, _ = reference_forward(inputs, rnn_hxs, params)
    assert value.shape == (B, 1) and actor.shape == (B, H)
    assert jnp.allclose(value, v_ref, atol=1e-5, rtol=1e-5)
    assert jnp.allclose(actor, a_ref, atol=1e-5, rtol=1e-5)

    # --- Case 2: larger hidden size -> un-fused kernel, >= 2 parallel batch tiles ---
    B2, F2, H2 = 19, 24, 128
    inputs2 = jax.random.normal(k_in2, (B2, F2), jnp.float32)
    rnn_hxs2 = jnp.zeros((B2, 1), jnp.float32)
    masks2 = jnp.ones((B2, 1), jnp.float32)
    params2 = init_params(k_param2, F2, H2)
    prepared2 = prepare_policy_params(params2)

    value2, actor2, _ = policy_forward(inputs2, rnn_hxs2, masks2, prepared2)
    jax.block_until_ready((value2, actor2))

    v_ref2, a_ref2, _ = reference_forward(inputs2, rnn_hxs2, params2)
    assert value2.shape == (B2, 1) and actor2.shape == (B2, H2)
    assert jnp.allclose(value2, v_ref2, atol=1e-4, rtol=1e-4)
    assert jnp.allclose(actor2, a_ref2, atol=1e-4, rtol=1e-4)

    print("KERNEL_OK")
</pallas_src>

<mosaic_0001>
module attributes {stable_mosaic.version = 11 : i64} {
  func.func @kernel(%arg0: i32, %arg1: memref<8x32xf32, #tpu.memory_space<vmem>>, %arg2: memref<32x64xf32, #tpu.memory_space<vmem>>, %arg3: memref<1x64xf32, #tpu.memory_space<vmem>>, %arg4: memref<64x64xf32, #tpu.memory_space<vmem>>, %arg5: memref<1x64xf32, #tpu.memory_space<vmem>>, %arg6: memref<64x128xf32, #tpu.memory_space<vmem>>, %arg7: memref<1x128xf32, #tpu.memory_space<vmem>>, %arg8: memref<1x128xf32, #tpu.memory_space<vmem>>, %arg9: memref<1x1xf32, #tpu.memory_space<smem>>, %arg10: memref<8x128xf32, #tpu.memory_space<vmem>>) attributes {dimension_semantics = [#tpu.dimension_semantics<parallel>], iteration_bounds = array<i64: 1>, scalar_prefetch = 0 : i64, scratch_operands = 0 : i64, tpu.core_type = #tpu.core_type<tc>, window_params = [{transform_indices = @transform_0, window_bounds = array<i64: 8, 32>}, {pipeline_mode = #tpu.pipeline_mode<synchronous>, transform_indices = @transform_1, window_bounds = array<i64: 32, 64>}, {pipeline_mode = #tpu.pipeline_mode<synchronous>, transform_indices = @transform_2, window_bounds = array<i64: 1, 64>}, {pipeline_mode = #tpu.pipeline_mode<synchronous>, transform_indices = @transform_3, window_bounds = array<i64: 64, 64>}, {pipeline_mode = #tpu.pipeline_mode<synchronous>, transform_indices = @transform_4, window_bounds = array<i64: 1, 64>}, {pipeline_mode = #tpu.pipeline_mode<synchronous>, transform_indices = @transform_5, window_bounds = array<i64: 64, 128>}, {pipeline_mode = #tpu.pipeline_mode<synchronous>, transform_indices = @transform_6, window_bounds = array<i64: 1, 128>}, {pipeline_mode = #tpu.pipeline_mode<synchronous>, transform_indices = @transform_7, window_bounds = array<i64: 1, 128>}, {transform_indices = @transform_8, window_bounds = array<i64: 1, 1>}, {transform_indices = @transform_9, window_bounds = array<i64: 8, 128>}]} {
    %c0 = arith.constant 0 : index
    %c0_0 = arith.constant 0 : index
    %0 = vector.load %arg1[%c0, %c0_0] : memref<8x32xf32, #tpu.memory_space<vmem>>, vector<8x32xf32>
    %c0_1 = arith.constant 0 : index
    %c0_2 = arith.constant 0 : index
    %1 = vector.load %arg2[%c0_1, %c0_2] : memref<32x64xf32, #tpu.memory_space<vmem>>, vector<32x64xf32>
    %cst = arith.constant dense<0.000000e+00> : vector<8x64xf32>
    %2 = tpu.matmul %0, %1, %cst {dimension_numbers = #tpu.dot_dimension_numbers<[1], [0], [0], [1], [0, 0, 1, 1], [], []>} : vector<8x32xf32>, vector<32x64xf32>, vector<8x64xf32> -> vector<8x64xf32>
    %c0_3 = arith.constant 0 : index
    %c0_4 = arith.constant 0 : index
    %3 = vector.load %arg3[%c0_3, %c0_4] : memref<1x64xf32, #tpu.memory_space<vmem>>, vector<1x64xf32>
    %4 = vector.broadcast %3 : vector<1x64xf32> to vector<8x64xf32>
    %5 = arith.addf %2, %4 : vector<8x64xf32>
    %cst_5 = arith.constant 0.000000e+00 : f32
    %6 = vector.broadcast %cst_5 : f32 to vector<8x64xf32>
    %7 = arith.cmpf oge, %5, %6 : vector<8x64xf32>
    %cst_6 = arith.constant 0.00999999977 : f32
    %8 = vector.broadcast %cst_6 : f32 to vector<8x64xf32>
    %9 = arith.mulf %8, %5 : vector<8x64xf32>
    %10 = arith.select %7, %5, %9 : vector<8x64xi1>, vector<8x64xf32>
    %c0_7 = arith.constant 0 : index
    %c0_8 = arith.constant 0 : index
    %11 = vector.load %arg4[%c0_7, %c0_8] : memref<64x64xf32, #tpu.memory_space<vmem>>, vector<64x64xf32>
    %cst_9 = arith.constant dense<0.000000e+00> : vector<8x64xf32>
    %12 = tpu.matmul %10, %11, %cst_9 {dimension_numbers = #tpu.dot_dimension_numbers<[1], [0], [0], [1], [0, 0, 1, 1], [], []>} : vector<8x64xf32>, vector<64x64xf32>, vector<8x64xf32> -> vector<8x64xf32>
    %c0_10 = arith.constant 0 : index
    %c0_11 = arith.constant 0 : index
    %13 = vector.load %arg5[%c0_10, %c0_11] : memref<1x64xf32, #tpu.memory_space<vmem>>, vector<1x64xf32>
    %14 = vector.broadcast %13 : vector<1x64xf32> to vector<8x64xf32>
    %15 = arith.addf %12, %14 : vector<8x64xf32>
    %cst_12 = arith.constant 0.000000e+00 : f32
    %16 = vector.broadcast %cst_12 : f32 to vector<8x64xf32>
    %17 = arith.cmpf oge, %15, %16 : vector<8x64xf32>
    %cst_13 = arith.constant 0.00999999977 : f32
    %18 = vector.broadcast %cst_13 : f32 to vector<8x64xf32>
    %19 = arith.mulf %18, %15 : vector<8x64xf32>
    %20 = arith.select %17, %15, %19 : vector<8x64xi1>, vector<8x64xf32>
    %c0_14 = arith.constant 0 : index
    %c0_15 = arith.constant 0 : index
    %21 = vector.load %arg6[%c0_14, %c0_15] : memref<64x128xf32, #tpu.memory_space<vmem>>, vector<64x128xf32>
    %cst_16 = arith.constant dense<0.000000e+00> : vector<8x128xf32>
    %22 = tpu.matmul %20, %21, %cst_16 {dimension_numbers = #tpu.dot_dimension_numbers<[1], [0], [0], [1], [0, 0, 1, 1], [], []>} : vector<8x64xf32>, vector<64x128xf32>, vector<8x128xf32> -> vector<8x128xf32>
    %c0_17 = arith.constant 0 : index
    %c0_18 = arith.constant 0 : index
    %23 = vector.load %arg7[%c0_17, %c0_18] : memref<1x128xf32, #tpu.memory_space<vmem>>, vector<1x128xf32>
    %24 = vector.broadcast %23 : vector<1x128xf32> to vector<8x128xf32>
    %25 = arith.addf %22, %24 : vector<8x128xf32>
    %cst_19 = arith.constant 0.000000e+00 : f32
    %26 = vector.broadcast %cst_19 : f32 to vector<8x128xf32>
    %27 = arith.cmpf oge, %25, %26 : vector<8x128xf32>
    %cst_20 = arith.constant 0.00999999977 : f32
    %28 = vector.broadcast %cst_20 : f32 to vector<8x128xf32>
    %29 = arith.mulf %28, %25 : vector<8x128xf32>
    %30 = arith.select %27, %25, %29 : vector<8x128xi1>, vector<8x128xf32>
    %c0_21 = arith.constant 0 : index
    %c0_22 = arith.constant 0 : index
    %31 = vector.load %arg8[%c0_21, %c0_22] : memref<1x128xf32, #tpu.memory_space<vmem>>, vector<1x128xf32>
    %32 = vector.broadcast %31 : vector<1x128xf32> to vector<8x128xf32>
    %33 = arith.mulf %30, %32 : vector<8x128xf32>
    %cst_23 = arith.constant dense<0.000000e+00> : vector<8xf32>
    %34 = vector.multi_reduction <add>, %33, %cst_23 [1] : vector<8x128xf32> to vector<8xf32>
    %35 = vector.shape_cast %34 : vector<8xf32> to vector<8x1xf32>
    %c0_24 = arith.constant 0 : index
    %c0_25 = arith.constant 0 : index
    %36 = memref.load %arg9[%c0_24, %c0_25] : memref<1x1xf32, #tpu.memory_space<smem>>
    %37 = vector.broadcast %36 : f32 to vector<8x1xf32>
    %38 = arith.addf %35, %37 : vector<8x1xf32>
    %39 = tpu.iota {dimensions = array<i32: 1>} : vector<8x128xi32>
    %c32_i32 = arith.constant 32 : i32
    %40 = vector.broadcast %c32_i32 : i32 to vector<8x128xi32>
    %41 = arith.cmpi slt, %39, %40 : vector<8x128xi32>
    %42 = vector.shape_cast %38 : vector<8x1xf32> to vector<8x1xf32>
    %43 = vector.broadcast %42 : vector<8x1xf32> to vector<8x128xf32>
    %44 = arith.select %41, %30, %43 : vector<8x128xi1>, vector<8x128xf32>
    %c0_26 = arith.constant 0 : index
    %c0_27 = arith.constant 0 : index
    %45 = vector.load %arg10[%c0_26, %c0_27] : memref<8x128xf32, #tpu.memory_space<vmem>>, vector<8x128xf32>
    tpu.vector_store %arg10[%c0_26, %c0_27], %44 {strides = array<i32>} : memref<8x128xf32, #tpu.memory_space<vmem>>, vector<8x128xf32>,
    return
  }
  func.func @transform_0(%arg0: i32) -> (i32, i32) {
    %c0_i32 = arith.constant 0 : i32
    %c0_i32_0 = arith.constant 0 : i32
    return %arg0, %c0_i32 : i32, i32
  }
  func.func @transform_1(%arg0: i32) -> (i32, i32) {
    %c0_i32 = arith.constant 0 : i32
    %c0_i32_0 = arith.constant 0 : i32
    %c0_i32_1 = arith.constant 0 : i32
    return %c0_i32, %c0_i32_0 : i32, i32
  }
  func.func @transform_2(%arg0: i32) -> (i32, i32) {
    %c0_i32 = arith.constant 0 : i32
    %c0_i32_0 = arith.constant 0 : i32
    %c0_i32_1 = arith.constant 0 : i32
    return %c0_i32, %c0_i32_0 : i32, i32
  }
  func.func @transform_3(%arg0: i32) -> (i32, i32) {
    %c0_i32 = arith.constant 0 : i32
    %c0_i32_0 = arith.constant 0 : i32
    %c0_i32_1 = arith.constant 0 : i32
    return %c0_i32, %c0_i32_0 : i32, i32
  }
  func.func @transform_4(%arg0: i32) -> (i32, i32) {
    %c0_i32 = arith.constant 0 : i32
    %c0_i32_0 = arith.constant 0 : i32
    %c0_i32_1 = arith.constant 0 : i32
    return %c0_i32, %c0_i32_0 : i32, i32
  }
  func.func @transform_5(%arg0: i32) -> (i32, i32) {
    %c0_i32 = arith.constant 0 : i32
    %c0_i32_0 = arith.constant 0 : i32
    %c0_i32_1 = arith.constant 0 : i32
    return %c0_i32, %c0_i32_0 : i32, i32
  }
  func.func @transform_6(%arg0: i32) -> (i32, i32) {
    %c0_i32 = arith.constant 0 : i32
    %c0_i32_0 = arith.constant 0 : i32
    %c0_i32_1 = arith.constant 0 : i32
    return %c0_i32, %c0_i32_0 : i32, i32
  }
  func.func @transform_7(%arg0: i32) -> (i32, i32) {
    %c0_i32 = arith.constant 0 : i32
    %c0_i32_0 = arith.constant 0 : i32
    %c0_i32_1 = arith.constant 0 : i32
    return %c0_i32, %c0_i32_0 : i32, i32
  }
  func.func @transform_8(%arg0: i32) -> (i32, i32) {
    %c0_i32 = arith.constant 0 : i32
    %c0_i32_0 = arith.constant 0 : i32
    %c0_i32_1 = arith.constant 0 : i32
    return %c0_i32, %c0_i32_0 : i32, i32
  }
  func.func @transform_9(%arg0: i32) -> (i32, i32) {
    %c0_i32 = arith.constant 0 : i32
    %c0_i32_0 = arith.constant 0 : i32
    return %arg0, %c0_i32 : i32, i32
  }
}

</mosaic_0001>

<llo_original>
// kernel: tpu_custom_call.1
$region0: #{tpu_custom_call.1}
  #allocation0 [shape = 'u32[]', space=smem, size = 0x4, offset = 0x4, fixed_abs, tag = 'smem constant byte address 0x4 - core index']
  #allocation1 [shape = 'u32[72,128]{1,0:T(1,128)}', space=vmem, size = 0x9000, scoped, tag = 'internal scratch']
  #allocation2 [shape = 'f32[1,1]{1,0:T(1,128)S(6)}', space=smem, size = 0x200, scoped, tag = 'scoped memory for tpu_custom_call.1']
  %s0 = inlined_call_operand.hbm [shape: f32[8,32], index: 0, kind: input, shape index: {}]
  %s1 = inlined_call_operand.hbm [shape: f32[32,64], index: 1, kind: input, shape index: {}]
  %s2 = inlined_call_operand.vmem [shape: f32[1,64], index: 2, kind: input, shape index: {}]
  %s3 = inlined_call_operand.hbm [shape: f32[64,64], index: 3, kind: input, shape index: {}]
  %s4 = inlined_call_operand.vmem [shape: f32[1,64], index: 4, kind: input, shape index: {}]
  %s5 = inlined_call_operand.hbm [shape: f32[64,128], index: 5, kind: input, shape index: {}]
  %s6 = inlined_call_operand.vmem [shape: f32[1,128], index: 6, kind: input, shape index: {}]
  %s7 = inlined_call_operand.vmem [shape: f32[1,128], index: 7, kind: input, shape index: {}]
  %s8 = inlined_call_operand.<no memory space> [shape: f32[1,1], index: 8, kind: input, shape index: {}]
  %s9 = inlined_call_operand.hbm [shape: f32[8,128], index: 9, kind: output, shape index: {}]
  %s10 = sld [smem:[#allocation0]]
  $region62: #{tpu_custom_call.1} parent=0
    _
  %s12 = ssub.s32 1, %s10
  %s13 = scalar_select 0, %s12, %s10
  %14 = sst [smem:[#allocation2]] %s8
  $region1: #{tpu_custom_call.1} parent=0
    #allocation3 [shape = 'u8[4096]{0}', space=vmem, size = 0x1000, scoped, tag = 'input window, operand 0, single buffered']
    #allocation4 [shape = 's32[1]{0}', space=sflag, size = 0x4, scoped, tag = 'scoped memory for tpu_custom_call.1']
    #allocation5 [shape = 's32[1]{0}', space=sflag, size = 0x4, scoped, tag = 'scoped memory for tpu_custom_call.1']
    #allocation6 [shape = 'u8[16384]{0}', space=vmem, size = 0x4000, scoped, tag = 'input window, operand 1, single buffered']
    #allocation7 [shape = 's32[1]{0}', space=sflag, size = 0x4, scoped, tag = 'scoped memory for tpu_custom_call.1']
    #allocation8 [shape = 'u8[32768]{0}', space=vmem, size = 0x8000, scoped, tag = 'input window, operand 3, single buffered']
    #allocation9 [shape = 'u8[32768]{0}', space=vmem, size = 0x8000, scoped, tag = 'input window, operand 5, single buffered']
    #allocation10 [shape = 's32[1]{0}', space=sflag, size = 0x4, scoped, tag = 'scoped memory for tpu_custom_call.1']
    #allocation11 [shape = 'u8[4096]{0}', space=vmem, size = 0x1000, scoped, tag = 'output window, operand 0, single buffered']
    %15 = vsyncpa [#allocation4], 0
    %16 = vsyncpa [#allocation7], 0
    %17 = vsyncpa [#allocation10], 0
    %18 = vsyncpa [#allocation5], 0
    // Predicated region
    $region2: #{tpu_custom_call.1} parent=1 // pred_check
      _
    $region3: #{tpu_custom_call.1} parent=1 // pred_check_branch
      %20 = sbr.rel (0) target = $region5
    $region4: #{tpu_custom_call.1} parent=1 // pred_region
      %22 = vsyncadd [#allocation4], 0
      %s24 = sshll.u32 %s0, 4
      %s25 = int_to_ptr.hbm [resolvable:$true] %s24
      %s26 = sshll.u32 [#allocation3], 4
      %s27 = int_to_ptr.vmem [resolvable:$true] %s26
      %29 = dma.hbm_to_vmem [thread:$0]  %s25, 128, %s27, [#allocation4]
    $region5: #{tpu_custom_call.1} parent=1 // pred_fallthru
      _
    // Predicated region
    $region6: #{tpu_custom_call.1} parent=1 // pred_check
      _
    $region7: #{tpu_custom_call.1} parent=1 // pred_check_branch
      %31 = sbr.rel (0) target = $region9
    $region8: #{tpu_custom_call.1} parent=1 // pred_region
      %33 = vsyncadd [#allocation7], 0
      %s34 = sshll.u32 %s1, 4
      %s35 = int_to_ptr.hbm [resolvable:$true] %s34
      %s36 = sshll.u32 [#allocation6], 4
      %s37 = int_to_ptr.vmem [resolvable:$true] %s36
      %42 = dma.hbm_to_vmem [thread:$0]  %s35, 512, %s37, [#allocation7], 128, 128, 8
    $region9: #{tpu_custom_call.1} parent=1 // pred_fallthru
      _
    // Predicated region
    $region10: #{tpu_custom_call.1} parent=1 // pred_check
      _
    $region11: #{tpu_custom_call.1} parent=1 // pred_check_branch
      %44 = sbr.rel (0) target = $region13
    $region12: #{tpu_custom_call.1} parent=1 // pred_region
      _
    $region13: #{tpu_custom_call.1} parent=1 // pred_fallthru
      _
    // Predicated region
    $region14: #{tpu_custom_call.1} parent=1 // pred_check
      _
    $region15: #{tpu_custom_call.1} parent=1 // pred_check_branch
      %46 = sbr.rel (0) target = $region17
    $region16: #{tpu_custom_call.1} parent=1 // pred_region
      %48 = vsyncadd [#allocation7], 0
      %s49 = sshll.u32 %s3, 4
      %s50 = int_to_ptr.hbm [resolvable:$true] %s49
      %s51 = sshll.u32 [#allocation8], 4
      %s52 = int_to_ptr.vmem [resolvable:$true] %s51
      %57 = dma.hbm_to_vmem [thread:$0]  %s50, 1024, %s52, [#allocation7], 128, 128, 8
    $region17: #{tpu_custom_call.1} parent=1 // pred_fallthru
      _
    // Predicated region
    $region18: #{tpu_custom_call.1} parent=1 // pred_check
      _
    $region19: #{tpu_custom_call.1} parent=1 // pred_check_branch
      %59 = sbr.rel (0) target = $region21
    $region20: #{tpu_custom_call.1} parent=1 // pred_region
      _
    $region21: #{tpu_custom_call.1} parent=1 // pred_fallthru
      _
    // Predicated region
    $region22: #{tpu_custom_call.1} parent=1 // pred_check
      _
    $region23: #{tpu_custom_call.1} parent=1 // pred_check_branch
      %61 = sbr.rel (0) target = $region25
    $region24: #{tpu_custom_call.1} parent=1 // pred_region
      %63 = vsyncadd [#allocation10], 0
      %s64 = sshll.u32 %s5, 4
      %s65 = int_to_ptr.hbm [resolvable:$true] %s64
      %s66 = sshll.u32 [#allocation9], 4
      %s67 = int_to_ptr.vmem [resolvable:$true] %s66
      %72 = dma.hbm_to_vmem [thread:$0]  %s65, 1024, %s67, [#allocation10], 128, 128, 8
    $region25: #{tpu_custom_call.1} parent=1 // pred_fallthru
      _
    // Predicated region
    $region26: #{tpu_custom_call.1} parent=1 // pred_check
      _
    $region27: #{tpu_custom_call.1} parent=1 // pred_check_branch
      %74 = sbr.rel (0) target = $region29
    $region28: #{tpu_custom_call.1} parent=1 // pred_region
      _
    $region29: #{tpu_custom_call.1} parent=1 // pred_fallthru
      _
    // Predicated region
    $region30: #{tpu_custom_call.1} parent=1 // pred_check
      _
    $region31: #{tpu_custom_call.1} parent=1 // pred_check_branch
      %76 = sbr.rel (0) target = $region33
    $region32: #{tpu_custom_call.1} parent=1 // pred_region
      _
    $region33: #{tpu_custom_call.1} parent=1 // pred_fallthru
      _
    // Predicated region
    $region34: #{tpu_custom_call.1} parent=1 // pred_check
      _
    $region35: #{tpu_custom_call.1} parent=1 // pred_check_branch
      %78 = sbr.rel (0) target = $region37
    $region36: #{tpu_custom_call.1} parent=1 // pred_region
      _
    $region37: #{tpu_custom_call.1} parent=1 // pred_fallthru
      _
    // Predicated region
    $region38: #{tpu_custom_call.1} parent=1 // pred_check
      _
    $region39: #{tpu_custom_call.1} parent=1 // pred_check_branch
      %80 = sbr.rel (0) target = $region41
    $region40: #{tpu_custom_call.1} parent=1 // pred_region
      %82 = dma.done [#allocation4], 128
    $region41: #{tpu_custom_call.1} parent=1 // pred_fallthru
      _
    // Predicated region
    $region42: #{tpu_custom_call.1} parent=1 // pred_check
      _
    $region43: #{tpu_custom_call.1} parent=1 // pred_check_branch
      %84 = sbr.rel (0) target = $region45
    $region44: #{tpu_custom_call.1} parent=1 // pred_region
      %86 = dma.done [#allocation7], 512
    $region45: #{tpu_custom_call.1} parent=1 // pred_fallthru
      _
    // Predicated region
    $region46: #{tpu_custom_call.1} parent=1 // pred_check
      _
    $region47: #{tpu_custom_call.1} parent=1 // pred_check_branch
      %88 = sbr.rel (0) target = $region49
    $region48: #{tpu_custom_call.1} parent=1 // pred_region
      %90 = dma.done [#allocation7], 1024
    $region49: #{tpu_custom_call.1} parent=1 // pred_fallthru
      _
    // Predicated region
    $region50: #{tpu_custom_call.1} parent=1 // pred_check
      _
    $region51: #{tpu_custom_call.1} parent=1 // pred_check_branch
      %92 = sbr.rel (0) target = $region53
    $region52: #{tpu_custom_call.1} parent=1 // pred_region
      %94 = dma.done [#allocation10], 1024
    $region53: #{tpu_custom_call.1} parent=1 // pred_fallthru
      _
    %v95 = vld [vmem:[#allocation3] sm:$0xff]
    %v96 = vld [vmem:[#allocation6] sm:$0xff]
    %v97 = vld [vmem:[#allocation6 + $0x8] sm:$0xff]
    %v98 = vld [vmem:[#allocation6 + $0x10] sm:$0xff]
    %v99 = vld [vmem:[#allocation6 + $0x18] sm:$0xff]
    %v100 = vld [vmem:[%s2] sm:$0x1]
    %v102 = vperm.slane %v100, 0
    %vm104 = vcmask 261120
    %v106 = vsel %vm104, %v95, 0
    %108 = vmatpush.msra.mxu0 0.0
    %109 = vmatpush.msra.mxu0 0.0
    %110 = vmatpush.msra.mxu0 0.0
    %111 = vmatpush.msra.mxu0 0.0
    %112 = vmatpush.msra.mxu0 0.0
    %113 = vmatpush.msra.mxu0 0.0
    %114 = vmatpush.msra.mxu0 0.0
    %115 = vmatpush.msra.mxu0 0.0
    %116 = vmatpush.msra.mxu0 0.0
    %117 = vmatpush.msra.mxu0 0.0
    %118 = vmatpush.msra.mxu0 0.0
    %119 = vmatpush.msra.mxu0 0.0
    %120 = vmatpush.msra.mxu0 %v99
    %121 = vmatpush.msra.mxu0 %v98
    %122 = vmatpush.msra.mxu0 %v97
    %123 = vmatpush.msra.mxu0 %v96
    %124 = vmatmul.f32.gmra.mxu0 %v106
    %v125 = vpop.f32.mrf.mxu0
    %v126 = vadd.f32 %v102, %v125
    %127 = vdwg.mxu0
    %vm128 = vcmp.ge.f32.partialorder %v126, 0.0
    %v129 = vmul.f32 %v126, 0.01
    %v130 = vsel %vm128, %v126, %v129
    %v131 = vld [vmem:[#allocation8] sm:$0xff]
    %v132 = vld [vmem:[#allocation8 + $0x8] sm:$0xff]
    %v133 = vld [vmem:[#allocation8 + $0x10] sm:$0xff]
    %v134 = vld [vmem:[#allocation8 + $0x18] sm:$0xff]
    %v135 = vld [vmem:[#allocation8 + $0x20] sm:$0xff]
    %v136 = vld [vmem:[#allocation8 + $0x28] sm:$0xff]
    %v137 = vld [vmem:[#allocation8 + $0x30] sm:$0xff]
    %v138 = vld [vmem:[#allocation8 + $0x38] sm:$0xff]
    %v139 = vld [vmem:[%s4] sm:$0x1]
    %v141 = vperm.slane %v139, 0
    %vm143 = vcmask 523264
    %v145 = vsel %vm143, %v130, 0
    %147 = vmatpush.msra.mxu0 0.0
    %148 = vmatpush.msra.mxu0 0.0
    %149 = vmatpush.msra.mxu0 0.0
    %150 = vmatpush.msra.mxu0 0.0
    %151 = vmatpush.msra.mxu0 0.0
    %152 = vmatpush.msra.mxu0 0.0
    %153 = vmatpush.msra.mxu0 0.0
    %154 = vmatpush.msra.mxu0 0.0
    %155 = vmatpush.msra.mxu0 %v138
    %156 = vmatpush.msra.mxu0 %v137
    %157 = vmatpush.msra.mxu0 %v136
    %158 = vmatpush.msra.mxu0 %v135
    %159 = vmatpush.msra.mxu0 %v134
    %160 = vmatpush.msra.mxu0 %v133
    %161 = vmatpush.msra.mxu0 %v132
    %162 = vmatpush.msra.mxu0 %v131
    %163 = vmatmul.f32.gmra.mxu0 %v145
    %v164 = vpop.f32.mrf.mxu0
    %v165 = vadd.f32 %v141, %v164
    %166 = vdwg.mxu0
    %vm167 = vcmp.ge.f32.partialorder %v165, 0.0
    %v168 = vmul.f32 %v165, 0.01
    %v169 = vsel %vm167, %v165, %v168
    %v170 = vld [vmem:[#allocation9] sm:$0xff]
    %v171 = vld [vmem:[#allocation9 + $0x8] sm:$0xff]
    %v172 = vld [vmem:[#allocation9 + $0x10] sm:$0xff]
    %v173 = vld [vmem:[#allocation9 + $0x18] sm:$0xff]
    %v174 = vld [vmem:[#allocation9 + $0x20] sm:$0xff]
    %v175 = vld [vmem:[#allocation9 + $0x28] sm:$0xff]
    %v176 = vld [vmem:[#allocation9 + $0x30] sm:$0xff]
    %v177 = vld [vmem:[#allocation9 + $0x38] sm:$0xff]
    %v178 = vld [vmem:[%s6] sm:$0x1]
    %v180 = vperm.slane %v178, 0
    %v183 = vsel %vm143, %v169, 0
    %185 = vmatpush.msra.mxu0 0.0
    %186 = vmatpush.msra.mxu0 0.0
    %187 = vmatpush.msra.mxu0 0.0
    %188 = vmatpush.msra.mxu0 0.0
    %189 = vmatpush.msra.mxu0 0.0
    %190 = vmatpush.msra.mxu0 0.0
    %191 = vmatpush.msra.mxu0 0.0
    %192 = vmatpush.msra.mxu0 0.0
    %193 = vmatpush.msra.mxu0 %v177
    %194 = vmatpush.msra.mxu0 %v176
    %195 = vmatpush.msra.mxu0 %v175
    %196 = vmatpush.msra.mxu0 %v174
    %197 = vmatpush.msra.mxu0 %v173
    %198 = vmatpush.msra.mxu0 %v172
    %199 = vmatpush.msra.mxu0 %v171
    %200 = vmatpush.msra.mxu0 %v170
    %201 = vmatmul.f32.gmra.mxu0 %v183
    %v202 = vpop.f32.mrf.mxu0
    %v203 = vadd.f32 %v180, %v202
    %204 = vdwg.mxu0
    %vm205 = vcmp.ge.f32.partialorder %v203, 0.0
    %v206 = vmul.f32 %v203, 0.01
    %v207 = vsel %vm205, %v203, %v206
    %v208 = vld [vmem:[%s7] sm:$0x1]
    %v210 = vperm.slane %v208, 0
    %v212 = vmul.f32 %v207, %v210
    %213 = vadd.xlane.f32.xlu0 %v212
    %v214 = vpop.xlane.xlu0 %213
    %s215 = sld [smem:[#allocation2]]
    %v216 = vstv %s215
    %v217 = vadd.f32 %v214, %v216
    %v218 = vlaneseq
    %v219 = vand.u32 %v218, 127
    %vm220 = vcmp.lt.s32.totalorder %v219, 32
    %v221 = vsel %vm220, %v207, %v217
    %222 = vst [vmem:[#allocation11] sm:$0xff] %v221
    // Predicated region
    $region54: #{tpu_custom_call.1} parent=1 // pred_check
      _
    $region55: #{tpu_custom_call.1} parent=1 // pred_check_branch
      %224 = sbr.rel (0) target = $region57
    $region56: #{tpu_custom_call.1} parent=1 // pred_region
      %226 = vsyncadd [#allocation5], 0
      %s228 = sshll.u32 [#allocation11], 4
      %s229 = int_to_ptr.vmem [resolvable:$true] %s228
      %s230 = sshll.u32 %s9, 4
      %s231 = int_to_ptr.hbm [resolvable:$true] %s230
      %233 = dma.vmem_to_hbm [thread:$0]  %s229, 128, %s231, [#allocation5]
    $region57: #{tpu_custom_call.1} parent=1 // pred_fallthru
      _
    // Predicated region
    $region58: #{tpu_custom_call.1} parent=1 // pred_check
      _
    $region59: #{tpu_custom_call.1} parent=1 // pred_check_branch
      %235 = sbr.rel (0) target = $region61
    $region60: #{tpu_custom_call.1} parent=1 // pred_region
      %237 = dma.done [#allocation5], 128
    $region61: #{tpu_custom_call.1} parent=1 // pred_fallthru
      _
    %238 = vsyncpa [#allocation4], 1
    %239 = vsyncpa [#allocation7], 1
    %240 = vsyncpa [#allocation10], 1
    %241 = vsyncpa [#allocation5], 1

</llo_original>
